<compile_context>
chip_gen: v5e
topology: v5e:2x2
jax: 0.10.0
libtpu: 0.0.40
codegen_flags: <defaults>
</compile_context>

<pallas_src>
import jax
import jax.numpy as jnp
from jax.experimental import pallas as pl
from jax.experimental.pallas import tpu as pltpu


def linear_kernel(x_ref, x_w_ref, b_ref, o_ref):
    # Pure VPU path: broadcast multiply-add, all in VMEM.
    x = x_ref[...]          # (TB, 1)
    w = x_w_ref[...]        # (1, out)
    b = b_ref[...]          # (1, out)
    o_ref[...] = (x * w + b).astype(o_ref.dtype)


def _round_up(n, m):
    return ((n + m - 1) // m) * m


def linear_forward(x, w_t, b, *, max_tile_rows=4096, min_grid_steps=4):
    """x: (B, in_f) f32; w_t: (in_f, out_f) f32; b: (1, out_f) f32 -> (B, out_f)."""
    B, in_f = x.shape
    out_f = w_t.shape[1]

    if B <= max_tile_rows:
        # Single block.  block_shape == full array dim is always legal, so tiny
        # batches (B = 2, 8, 10, ...) need no padding and no (8,128) concerns.
        TB = B
    else:
        # Big batch: ensure at least `min_grid_steps` grid steps so the
        # "parallel" axis shards across both TensorCores on v7x, and cap TB so
        # double-buffered blocks stay within v5e's 16 MiB scoped-VMEM default.
        steps = max(min_grid_steps, pl.cdiv(B, max_tile_rows))
        TB = min(max_tile_rows, _round_up(pl.cdiv(B, steps), 8))

    grid = (pl.cdiv(B, TB),)
    bytes_accessed = 4 * (B * in_f + in_f * out_f + out_f + B * out_f)

    return pl.pallas_call(
        linear_kernel,
        out_shape=jax.ShapeDtypeStruct((B, out_f), jnp.float32),
        grid=grid,
        in_specs=[
            pl.BlockSpec((TB, in_f), lambda i: (i, 0)),     # x: streamed per tile
            pl.BlockSpec((in_f, out_f), lambda i: (0, 0)),  # w: constant block, stays resident
            pl.BlockSpec((1, out_f), lambda i: (0, 0)),     # b: constant block, stays resident
        ],
        out_specs=pl.BlockSpec((TB, out_f), lambda i: (i, 0)),
        compiler_params=pltpu.CompilerParams(
            dimension_semantics=("parallel",),  # megacore sharding on v7x
        ),
        cost_estimate=pl.CostEstimate(
            flops=2 * B * in_f * out_f,
            transcendentals=0,
            bytes_accessed=bytes_accessed,
        ),
    )(x, w_t, b)


def init_params(key, in_features=1, out_features=10):
    # Deterministic init mimicking PyTorch's nn.Linear default:
    # U(-1/sqrt(in_features), 1/sqrt(in_features)) for both weight and bias.
    kw, kb = jax.random.split(key)
    bound = 1.0 / (in_features ** 0.5)
    w = jax.random.uniform(kw, (out_features, in_features), jnp.float32, -bound, bound)
    b = jax.random.uniform(kb, (out_features,), jnp.float32, -bound, bound)
    # store weight transposed for the kernel (in, out), bias as (1, out)
    return w.T, b.reshape(1, out_features)


if __name__ == "__main__":
    key = jax.random.PRNGKey(0)
    k_param, k_x, k_x2 = jax.random.split(key, 3)

    in_features, out_features = 1, 10
    w_t, b = init_params(k_param, in_features, out_features)

    # Small shape consistent with the module's forward (single Linear(1, 10)).
    batch = 8
    x = jax.random.normal(k_x, (batch, in_features), jnp.float32)
    y = jax.block_until_ready(linear_forward(x, w_t, b))
    y_ref = x @ w_t + b
    assert y.shape == (batch, out_features)
    assert jnp.allclose(y, y_ref, atol=1e-5, rtol=1e-5)

    # Exercise the multi-step / partial-tail-block path (non-divisible B) that
    # replaced the old pad + slice wrapper, to verify masked tail writes.
    batch2 = 5000
    x2 = jax.random.normal(k_x2, (batch2, in_features), jnp.float32)
    y2 = jax.block_until_ready(linear_forward(x2, w_t, b))
    y2_ref = x2 @ w_t + b
    assert y2.shape == (batch2, out_features)
    assert jnp.allclose(y2, y2_ref, atol=1e-5, rtol=1e-5)

    print("KERNEL_OK")
</pallas_src>

<mosaic_0001>
module attributes {stable_mosaic.version = 11 : i64} {
  func.func @linear_kernel(%arg0: i32, %arg1: memref<8x1xf32, #tpu.memory_space<vmem>>, %arg2: memref<1x10xf32, #tpu.memory_space<vmem>>, %arg3: memref<1x10xf32, #tpu.memory_space<vmem>>, %arg4: memref<8x10xf32, #tpu.memory_space<vmem>>) attributes {dimension_semantics = [#tpu.dimension_semantics<parallel>], iteration_bounds = array<i64: 1>, scalar_prefetch = 0 : i64, scratch_operands = 0 : i64, tpu.core_type = #tpu.core_type<tc>, window_params = [{transform_indices = @transform_0, window_bounds = array<i64: 8, 1>}, {pipeline_mode = #tpu.pipeline_mode<synchronous>, transform_indices = @transform_1, window_bounds = array<i64: 1, 10>}, {pipeline_mode = #tpu.pipeline_mode<synchronous>, transform_indices = @transform_2, window_bounds = array<i64: 1, 10>}, {transform_indices = @transform_3, window_bounds = array<i64: 8, 10>}]} {
    %c0 = arith.constant 0 : index
    %c0_0 = arith.constant 0 : index
    %0 = vector.load %arg1[%c0, %c0_0] : memref<8x1xf32, #tpu.memory_space<vmem>>, vector<8x1xf32>
    %c0_1 = arith.constant 0 : index
    %c0_2 = arith.constant 0 : index
    %1 = vector.load %arg2[%c0_1, %c0_2] : memref<1x10xf32, #tpu.memory_space<vmem>>, vector<1x10xf32>
    %c0_3 = arith.constant 0 : index
    %c0_4 = arith.constant 0 : index
    %2 = vector.load %arg3[%c0_3, %c0_4] : memref<1x10xf32, #tpu.memory_space<vmem>>, vector<1x10xf32>
    %3 = vector.broadcast %0 : vector<8x1xf32> to vector<8x10xf32>
    %4 = vector.broadcast %1 : vector<1x10xf32> to vector<8x10xf32>
    %5 = arith.mulf %3, %4 : vector<8x10xf32>
    %6 = vector.broadcast %2 : vector<1x10xf32> to vector<8x10xf32>
    %7 = arith.addf %5, %6 : vector<8x10xf32>
    %c0_5 = arith.constant 0 : index
    %c0_6 = arith.constant 0 : index
    %8 = vector.load %arg4[%c0_5, %c0_6] : memref<8x10xf32, #tpu.memory_space<vmem>>, vector<8x10xf32>
    tpu.vector_store %arg4[%c0_5, %c0_6], %7 {strides = array<i32>} : memref<8x10xf32, #tpu.memory_space<vmem>>, vector<8x10xf32>,
    return
  }
  func.func @transform_0(%arg0: i32) -> (i32, i32) {
    %c0_i32 = arith.constant 0 : i32
    %c0_i32_0 = arith.constant 0 : i32
    return %arg0, %c0_i32 : i32, i32
  }
  func.func @transform_1(%arg0: i32) -> (i32, i32) {
    %c0_i32 = arith.constant 0 : i32
    %c0_i32_0 = arith.constant 0 : i32
    %c0_i32_1 = arith.constant 0 : i32
    return %c0_i32, %c0_i32_0 : i32, i32
  }
  func.func @transform_2(%arg0: i32) -> (i32, i32) {
    %c0_i32 = arith.constant 0 : i32
    %c0_i32_0 = arith.constant 0 : i32
    %c0_i32_1 = arith.constant 0 : i32
    return %c0_i32, %c0_i32_0 : i32, i32
  }
  func.func @transform_3(%arg0: i32) -> (i32, i32) {
    %c0_i32 = arith.constant 0 : i32
    %c0_i32_0 = arith.constant 0 : i32
    return %arg0, %c0_i32 : i32, i32
  }
}

</mosaic_0001>

<llo_original>
// kernel: tpu_custom_call.1
$region0: #{tpu_custom_call.1}
  #allocation0 [shape = 'u32[]', space=smem, size = 0x4, offset = 0x4, fixed_abs, tag = 'smem constant byte address 0x4 - core index']
  #allocation1 [shape = 'u32[72,128]{1,0:T(1,128)}', space=vmem, size = 0x9000, scoped, tag = 'internal scratch']
  %s0 = inlined_call_operand.vmem [shape: f32[8,1], index: 0, kind: input, shape index: {}]
  %s1 = inlined_call_operand.vmem [shape: f32[1,10], index: 1, kind: input, shape index: {}]
  %s2 = inlined_call_operand.vmem [shape: f32[1,10], index: 2, kind: input, shape index: {}]
  %s3 = inlined_call_operand.hbm [shape: f32[8,10], index: 3, kind: output, shape index: {}]
  %s4 = sld [smem:[#allocation0]]
  $region22: #{tpu_custom_call.1} parent=0
    _
  %s6 = ssub.s32 1, %s4
  %s7 = scalar_select 0, %s6, %s4
  $region1: #{tpu_custom_call.1} parent=0
    #allocation2 [shape = 'u8[4096]{0}', space=vmem, size = 0x1000, scoped, tag = 'output window, operand 0, single buffered']
    #allocation3 [shape = 's32[1]{0}', space=sflag, size = 0x4, scoped, tag = 'scoped memory for tpu_custom_call.1']
    %8 = vsyncpa [#allocation3], 0
    // Predicated region
    $region2: #{tpu_custom_call.1} parent=1 // pred_check
      _
    $region3: #{tpu_custom_call.1} parent=1 // pred_check_branch
      %10 = sbr.rel (0) target = $region5
    $region4: #{tpu_custom_call.1} parent=1 // pred_region
      _
    $region5: #{tpu_custom_call.1} parent=1 // pred_fallthru
      _
    // Predicated region
    $region6: #{tpu_custom_call.1} parent=1 // pred_check
      _
    $region7: #{tpu_custom_call.1} parent=1 // pred_check_branch
      %12 = sbr.rel (0) target = $region9
    $region8: #{tpu_custom_call.1} parent=1 // pred_region
      _
    $region9: #{tpu_custom_call.1} parent=1 // pred_fallthru
      _
    // Predicated region
    $region10: #{tpu_custom_call.1} parent=1 // pred_check
      _
    $region11: #{tpu_custom_call.1} parent=1 // pred_check_branch
      %14 = sbr.rel (0) target = $region13
    $region12: #{tpu_custom_call.1} parent=1 // pred_region
      _
    $region13: #{tpu_custom_call.1} parent=1 // pred_fallthru
      _
    %v15 = vld [vmem:[%s0] sm:$0xff]
    %v16 = vld [vmem:[%s1] sm:$0x1]
    %v17 = vld [vmem:[%s2] sm:$0x1]
    %19 = vset.pattern.permute.xlu0 0
    %20 = vperm.xlu0 %19, %v15
    %v21 = vpop.permute.xlu0 %20
    %v24 = vperm.slane %v16, 0
    %v26 = vmul.f32 %v21, %v24
    %v28 = vperm.slane %v17, 0
    %v30 = vadd.f32 %v26, %v28
    %vm31 = vcmask 80896
    %32 = vst.msk [vmem:[#allocation2] sm:$0xff] %vm31, %v30
    // Predicated region
    $region14: #{tpu_custom_call.1} parent=1 // pred_check
      _
    $region15: #{tpu_custom_call.1} parent=1 // pred_check_branch
      %34 = sbr.rel (0) target = $region17
    $region16: #{tpu_custom_call.1} parent=1 // pred_region
      %36 = vsyncadd [#allocation3], 0
      %s38 = sshll.u32 [#allocation2], 4
      %s39 = int_to_ptr.vmem [resolvable:$true] %s38
      %s40 = sshll.u32 %s3, 4
      %s41 = int_to_ptr.hbm [resolvable:$true] %s40
      %43 = dma.vmem_to_hbm [thread:$0]  %s39, 128, %s41, [#allocation3]
    $region17: #{tpu_custom_call.1} parent=1 // pred_fallthru
      _
    // Predicated region
    $region18: #{tpu_custom_call.1} parent=1 // pred_check
      _
    $region19: #{tpu_custom_call.1} parent=1 // pred_check_branch
      %45 = sbr.rel (0) target = $region21
    $region20: #{tpu_custom_call.1} parent=1 // pred_region
      %47 = dma.done [#allocation3], 128
    $region21: #{tpu_custom_call.1} parent=1 // pred_fallthru
      _
    %48 = vsyncpa [#allocation3], 1

</llo_original>
